<compile_context>
chip_gen: v7x
topology: tpu7x:2x2x1
jax: 0.10.0
libtpu: 0.0.40
codegen_flags: <defaults>
</compile_context>

<pallas_src>
import functools

import jax
import jax.numpy as jnp
from jax.experimental import pallas as pl
from jax.experimental.pallas import tpu as pltpu


_EPS = 1e-5    # nn.BatchNorm1d default eps
_SLOPE = 0.1   # nn.LeakyReLU(0.1)


def _leaky_relu(v):
    # For slope < 1, LeakyReLU(v) == max(v, slope*v): one vmul + one vmax.
    return jnp.maximum(v, _SLOPE * v)


def _round_up(n, m):
    return ((n + m - 1) // m) * m


# ----------------------------------------------------------------------------
# Kernel
# ----------------------------------------------------------------------------
def nbeats_kernel(x_ref, w_ref, vec_ref, out_ref, *, in_f, in_p, h2p):
    """Fused N-BEATS forward, one program, whole batch in one block.

    x_ref   : (B, in_f)            f32
    w_ref   : (in_p+h2p, h2p+outp) bf16 packed weights
                rows [0, in_f)        : [ tW1|sW1 (lanes :2h) | tWr+sWr+kW (lanes h2p:) ]
                rows [in_p, in_p+h2p) : [ blockdiag(tW2, sW2) | [tW3; sW3]              ]
    vec_ref : (8, h2p+outp)        f32  row0=[b1|b_out] row1=gamma row2=beta row3=b2
    out_ref : (B, out_size)        f32
    """
    out_size = out_ref.shape[1]
    outp = w_ref.shape[1] - h2p

    x = x_ref[...].astype(jnp.bfloat16)                     # (B, in_f)

    # --- matmul 1 (fused): first layers of both blocks + summed resid/skip ---
    w1r = w_ref[pl.ds(0, in_f), :]                          # (in_f, h2p+outp)
    fused = jnp.dot(x, w1r, preferred_element_type=jnp.float32)
    h = fused[:, :h2p]                                      # (B, h2p)  pre-BN
    resid = fused[:, h2p:]                                  # (B, outp) x@(tWr+sWr+kW)

    vec = vec_ref[...]
    b1, gamma = vec[0:1, :h2p], vec[1:2, :h2p]
    beta, b2 = vec[2:3, :h2p], vec[3:4, :h2p]
    b_out = vec[0:1, h2p:]                                  # tb3+sb3+tbr+sbr+kb

    h = h + b1
    # BatchNorm1d (training mode, biased batch variance).  Statistics are
    # over the rows THIS program sees -- exact only while the whole batch is
    # one block (see module-level note about batch grids).
    mean = jnp.mean(h, axis=0, keepdims=True)
    diff = h - mean
    var = jnp.mean(diff * diff, axis=0, keepdims=True)
    h = diff * jax.lax.rsqrt(var + _EPS) * gamma + beta
    h = _leaky_relu(h)

    # --- matmul 2: block-diagonal second layers (zero quadrants are free) ---
    w2 = w_ref[pl.ds(in_p, h2p), pl.ds(0, h2p)]
    h = _leaky_relu(
        jnp.dot(h.astype(jnp.bfloat16), w2, preferred_element_type=jnp.float32)
        + b2)

    # --- matmul 3: stacked third layers + residual/skip + fused output bias ---
    w3 = w_ref[pl.ds(in_p, h2p), pl.ds(h2p, outp)]
    out = (jnp.dot(h.astype(jnp.bfloat16), w3, preferred_element_type=jnp.float32)
           + resid + b_out)

    # Narrow masked store: no 128-lane padded HBM writeback, no post-kernel slice.
    out_ref[...] = out[:, :out_size].astype(out_ref.dtype)


# ----------------------------------------------------------------------------
# Parameter packing: 22 raw module params -> 2 kernel operands (+ x)
# ----------------------------------------------------------------------------
def pack_nbeats_params(params, weight_dtype=jnp.bfloat16):
    (tW1, tb1, tg, tbe, tW2, tb2, tW3, tb3, tWr, tbr,
     sW1, sb1, sg, sbe, sW2, sb2, sW3, sb3, sWr, sbr,
     kW, kb) = params
    in_f, hidden = tW1.shape
    out_size = tW3.shape[1]
    h2 = 2 * hidden
    h2p = _round_up(h2, 128)            # lane-padded activation width
    outp = _round_up(out_size, 128)     # internal (padded) output lane width
    lanes = h2p + outp
    in_p = _round_up(in_f, 16)          # bf16 sublane alignment for row blocks

    # Top row block: fused first layer + summed residual/skip projection.
    w1 = jnp.concatenate([tW1, sW1], axis=1)                      # (in, 2h)
    wr = tWr + sWr + kW                                           # (in, out)
    top = jnp.zeros((in_p, lanes), jnp.float32)
    top = top.at[:in_f, :h2].set(w1)
    top = top.at[:in_f, h2p:h2p + out_size].set(wr)

    # Bottom row block: [blockdiag(tW2, sW2) | stacked [tW3; sW3]].
    bot = jnp.zeros((h2p, lanes), jnp.float32)
    bot = bot.at[:hidden, :hidden].set(tW2)
    bot = bot.at[hidden:h2, hidden:h2].set(sW2)
    bot = bot.at[:h2, h2p:h2p + out_size].set(
        jnp.concatenate([tW3, sW3], axis=0))

    w_packed = jnp.concatenate([top, bot], axis=0).astype(weight_dtype)

    # Bias / BatchNorm vectors, kept f32 for accuracy.
    b_out = tb3 + sb3 + tbr + sbr + kb                            # (1, out)
    vec = jnp.zeros((8, lanes), jnp.float32)
    vec = vec.at[0, :h2].set(jnp.concatenate([tb1, sb1], axis=1)[0])
    vec = vec.at[0, h2p:h2p + out_size].set(b_out[0])
    vec = vec.at[1, :h2].set(jnp.concatenate([tg, sg], axis=1)[0])
    vec = vec.at[2, :h2].set(jnp.concatenate([tbe, sbe], axis=1)[0])
    vec = vec.at[3, :h2].set(jnp.concatenate([tb2, sb2], axis=1)[0])

    meta = dict(in_f=in_f, in_p=in_p, h2p=h2p, outp=outp, out_size=out_size)
    return w_packed, vec, meta


# ----------------------------------------------------------------------------
# Wrapper
# ----------------------------------------------------------------------------
def nbeats_forward(x, w_packed, vec, meta):
    """x: (B, input_size) f32.  Returns (B, output_size) f32."""
    B = x.shape[0]
    in_f, in_p, h2p, outp = meta["in_f"], meta["in_p"], meta["h2p"], meta["outp"]
    out_size = meta["out_size"]
    vmem = pl.BlockSpec(memory_space=pltpu.MemorySpace.VMEM)

    flops = 2 * B * (in_f * (h2p + outp) + h2p * h2p + h2p * outp)
    bytes_accessed = int(x.size * x.dtype.itemsize
                         + w_packed.size * w_packed.dtype.itemsize
                         + vec.size * vec.dtype.itemsize
                         + B * out_size * 4)

    kernel = functools.partial(nbeats_kernel, in_f=in_f, in_p=in_p, h2p=h2p)
    return pl.pallas_call(
        kernel,
        out_shape=jax.ShapeDtypeStruct((B, out_size), jnp.float32),
        in_specs=[vmem, vmem, vmem],
        out_specs=vmem,
        compiler_params=pltpu.CompilerParams(
            vmem_limit_bytes=32 * 1024 * 1024),
        cost_estimate=pl.CostEstimate(
            flops=int(flops),
            transcendentals=int(h2p),          # rsqrt over the BN row
            bytes_accessed=bytes_accessed),
    )(x, w_packed, vec)


# ----------------------------------------------------------------------------
# Deterministic parameter construction (PyTorch-like uniform(+-1/sqrt(fan_in)))
# ----------------------------------------------------------------------------
def _linear_params(key, in_f, out_f):
    k_w, k_b = jax.random.split(key)
    bound = 1.0 / jnp.sqrt(jnp.float32(in_f))
    W = jax.random.uniform(k_w, (in_f, out_f), jnp.float32, -bound, bound)
    b = jax.random.uniform(k_b, (1, out_f), jnp.float32, -bound, bound)
    return W, b


def _residual_block_params(key, in_f, hidden, out_f):
    ks = jax.random.split(key, 4)
    W1, b1 = _linear_params(ks[0], in_f, hidden)
    gamma = jnp.ones((1, hidden), jnp.float32)
    beta = jnp.zeros((1, hidden), jnp.float32)
    W2, b2 = _linear_params(ks[1], hidden, hidden)
    W3, b3 = _linear_params(ks[2], hidden, out_f)
    Wr, br = _linear_params(ks[3], in_f, out_f)
    return [W1, b1, gamma, beta, W2, b2, W3, b3, Wr, br]


def make_nbeats_params(key, input_size, hidden_size, output_size):
    k_t, k_s, k_k = jax.random.split(key, 3)
    params = []
    params += _residual_block_params(k_t, input_size, hidden_size, output_size)
    params += _residual_block_params(k_s, input_size, hidden_size, output_size)
    kW, kb = _linear_params(k_k, input_size, output_size)
    params += [kW, kb]
    return params


# ----------------------------------------------------------------------------
# Pure-JAX f32 reference (original, unfused math) for a sanity check.
# ----------------------------------------------------------------------------
def _residual_block_ref(x, W1, b1, gamma, beta, W2, b2, W3, b3, Wr, br):
    h = jnp.dot(x, W1) + b1
    mean = jnp.mean(h, axis=0, keepdims=True)
    var = jnp.mean((h - mean) ** 2, axis=0, keepdims=True)
    h = (h - mean) * jax.lax.rsqrt(var + _EPS) * gamma + beta
    h = jnp.maximum(h, _SLOPE * h)
    h = jnp.maximum(jnp.dot(h, W2) + b2, _SLOPE * (jnp.dot(h, W2) + b2))
    h = jnp.dot(h, W3) + b3
    return h + jnp.dot(x, Wr) + br


def _ref_forward(x, params):
    t = _residual_block_ref(x, *params[0:10])
    s = _residual_block_ref(x, *params[10:20])
    k = jnp.dot(x, params[20]) + params[21]
    return t + s + k


if __name__ == "__main__":
    BATCH = 8
    INPUT_SIZE = 16
    HIDDEN_SIZE = 32
    OUTPUT_SIZE = 1

    key = jax.random.PRNGKey(0)
    k_x, k_p = jax.random.split(key)
    x = jax.random.normal(k_x, (BATCH, INPUT_SIZE), jnp.float32)
    params = make_nbeats_params(k_p, INPUT_SIZE, HIDDEN_SIZE, OUTPUT_SIZE)

    w_packed, vec, meta = pack_nbeats_params(params)
    out = nbeats_forward(x, w_packed, vec, meta)
    out = jax.block_until_ready(out)

    ref = _ref_forward(x, params)
    assert out.shape == (BATCH, OUTPUT_SIZE), out.shape
    # Matmul inputs are bf16 (accumulation, BN stats, biases stay f32), so the
    # check against the pure-f32 reference uses a loosened tolerance.  A real
    # math/fusion bug would produce O(1) errors and still be caught.
    assert jnp.allclose(out, ref, atol=1e-1, rtol=1e-1), (out, ref)

    print("KERNEL_OK")
</pallas_src>

<mosaic_0001>
module attributes {stable_mosaic.version = 11 : i64} {
  func.func @nbeats_kernel(%arg0: memref<8x16xf32, #tpu.memory_space<vmem>>, %arg1: memref<144x256xbf16, #tpu.memory_space<vmem>>, %arg2: memref<8x256xf32, #tpu.memory_space<vmem>>, %arg3: memref<8x1xf32, #tpu.memory_space<vmem>>) attributes {dimension_semantics = [], scalar_prefetch = 0 : i64, scratch_operands = 0 : i64, tpu.core_type = #tpu.core_type<tc>} {
    %c0 = arith.constant 0 : index
    %c0_0 = arith.constant 0 : index
    %0 = vector.load %arg0[%c0, %c0_0] : memref<8x16xf32, #tpu.memory_space<vmem>>, vector<8x16xf32>
    %1 = arith.truncf %0 : vector<8x16xf32> to vector<8x16xbf16>
    %c0_1 = arith.constant 0 : index
    %c0_2 = arith.constant 0 : index
    %2 = vector.load %arg1[%c0_1, %c0_2] : memref<144x256xbf16, #tpu.memory_space<vmem>>, vector<16x256xbf16>
    %cst = arith.constant dense<0.000000e+00> : vector<8x256xf32>
    %3 = tpu.matmul %1, %2, %cst {dimension_numbers = #tpu.dot_dimension_numbers<[1], [0], [0], [1], [0, 0, 1, 1], [], []>} : vector<8x16xbf16>, vector<16x256xbf16>, vector<8x256xf32> -> vector<8x256xf32>
    %4 = vector.extract_strided_slice %3 {offsets = [0, 0], sizes = [8, 128], strides = [1, 1]} : vector<8x256xf32> to vector<8x128xf32>
    %5 = vector.extract_strided_slice %3 {offsets = [0, 128], sizes = [8, 128], strides = [1, 1]} : vector<8x256xf32> to vector<8x128xf32>
    %c0_3 = arith.constant 0 : index
    %c0_4 = arith.constant 0 : index
    %6 = vector.load %arg2[%c0_3, %c0_4] : memref<8x256xf32, #tpu.memory_space<vmem>>, vector<8x256xf32>
    %7 = vector.extract_strided_slice %6 {offsets = [0, 0], sizes = [1, 128], strides = [1, 1]} : vector<8x256xf32> to vector<1x128xf32>
    %8 = vector.extract_strided_slice %6 {offsets = [1, 0], sizes = [1, 128], strides = [1, 1]} : vector<8x256xf32> to vector<1x128xf32>
    %9 = vector.extract_strided_slice %6 {offsets = [2, 0], sizes = [1, 128], strides = [1, 1]} : vector<8x256xf32> to vector<1x128xf32>
    %10 = vector.extract_strided_slice %6 {offsets = [3, 0], sizes = [1, 128], strides = [1, 1]} : vector<8x256xf32> to vector<1x128xf32>
    %11 = vector.extract_strided_slice %6 {offsets = [0, 128], sizes = [1, 128], strides = [1, 1]} : vector<8x256xf32> to vector<1x128xf32>
    %12 = vector.broadcast %7 : vector<1x128xf32> to vector<8x128xf32>
    %13 = arith.addf %4, %12 : vector<8x128xf32>
    %cst_5 = arith.constant dense<0.000000e+00> : vector<128xf32>
    %14 = vector.multi_reduction <add>, %13, %cst_5 [0] : vector<8x128xf32> to vector<128xf32>
    %15 = vector.shape_cast %14 : vector<128xf32> to vector<1x128xf32>
    %cst_6 = arith.constant 8.000000e+00 : f32
    %16 = vector.broadcast %cst_6 : f32 to vector<1x128xf32>
    %17 = arith.divf %15, %16 : vector<1x128xf32>
    %18 = vector.broadcast %17 : vector<1x128xf32> to vector<8x128xf32>
    %19 = arith.subf %13, %18 : vector<8x128xf32>
    %20 = arith.mulf %19, %19 : vector<8x128xf32>
    %cst_7 = arith.constant dense<0.000000e+00> : vector<128xf32>
    %21 = vector.multi_reduction <add>, %20, %cst_7 [0] : vector<8x128xf32> to vector<128xf32>
    %22 = vector.shape_cast %21 : vector<128xf32> to vector<1x128xf32>
    %cst_8 = arith.constant 8.000000e+00 : f32
    %23 = vector.broadcast %cst_8 : f32 to vector<1x128xf32>
    %24 = arith.divf %22, %23 : vector<1x128xf32>
    %cst_9 = arith.constant 9.99999974E-6 : f32
    %25 = vector.broadcast %cst_9 : f32 to vector<1x128xf32>
    %26 = arith.addf %24, %25 : vector<1x128xf32>
    %27 = math.rsqrt %26 : vector<1x128xf32>
    %28 = vector.broadcast %27 : vector<1x128xf32> to vector<8x128xf32>
    %29 = arith.mulf %19, %28 : vector<8x128xf32>
    %30 = vector.broadcast %8 : vector<1x128xf32> to vector<8x128xf32>
    %31 = arith.mulf %29, %30 : vector<8x128xf32>
    %32 = vector.broadcast %9 : vector<1x128xf32> to vector<8x128xf32>
    %33 = arith.addf %31, %32 : vector<8x128xf32>
    %cst_10 = arith.constant 1.000000e-01 : f32
    %34 = vector.broadcast %cst_10 : f32 to vector<8x128xf32>
    %35 = arith.mulf %34, %33 : vector<8x128xf32>
    %36 = arith.maximumf %33, %35 : vector<8x128xf32>
    %c16 = arith.constant 16 : index
    %c0_11 = arith.constant 0 : index
    %37 = vector.load %arg1[%c16, %c0_11] : memref<144x256xbf16, #tpu.memory_space<vmem>>, vector<128x128xbf16>
    %38 = arith.truncf %36 : vector<8x128xf32> to vector<8x128xbf16>
    %cst_12 = arith.constant dense<0.000000e+00> : vector<8x128xf32>
    %39 = tpu.matmul %38, %37, %cst_12 {dimension_numbers = #tpu.dot_dimension_numbers<[1], [0], [0], [1], [0, 0, 1, 1], [], []>} : vector<8x128xbf16>, vector<128x128xbf16>, vector<8x128xf32> -> vector<8x128xf32>
    %40 = vector.broadcast %10 : vector<1x128xf32> to vector<8x128xf32>
    %41 = arith.addf %39, %40 : vector<8x128xf32>
    %cst_13 = arith.constant 1.000000e-01 : f32
    %42 = vector.broadcast %cst_13 : f32 to vector<8x128xf32>
    %43 = arith.mulf %42, %41 : vector<8x128xf32>
    %44 = arith.maximumf %41, %43 : vector<8x128xf32>
    %c16_14 = arith.constant 16 : index
    %c128 = arith.constant 128 : index
    %45 = vector.load %arg1[%c16_14, %c128] : memref<144x256xbf16, #tpu.memory_space<vmem>>, vector<128x128xbf16>
    %46 = arith.truncf %44 : vector<8x128xf32> to vector<8x128xbf16>
    %cst_15 = arith.constant dense<0.000000e+00> : vector<8x128xf32>
    %47 = tpu.matmul %46, %45, %cst_15 {dimension_numbers = #tpu.dot_dimension_numbers<[1], [0], [0], [1], [0, 0, 1, 1], [], []>} : vector<8x128xbf16>, vector<128x128xbf16>, vector<8x128xf32> -> vector<8x128xf32>
    %48 = arith.addf %47, %5 : vector<8x128xf32>
    %49 = vector.broadcast %11 : vector<1x128xf32> to vector<8x128xf32>
    %50 = arith.addf %48, %49 : vector<8x128xf32>
    %51 = vector.extract_strided_slice %50 {offsets = [0, 0], sizes = [8, 1], strides = [1, 1]} : vector<8x128xf32> to vector<8x1xf32>
    %c0_16 = arith.constant 0 : index
    %c0_17 = arith.constant 0 : index
    %52 = vector.load %arg3[%c0_16, %c0_17] : memref<8x1xf32, #tpu.memory_space<vmem>>, vector<8x1xf32>
    tpu.vector_store %arg3[%c0_16, %c0_17], %51 {strides = array<i32>} : memref<8x1xf32, #tpu.memory_space<vmem>>, vector<8x1xf32>,
    return
  }
}

</mosaic_0001>

<llo_original>
// kernel: tpu_custom_call.1
$region0: #{tpu_custom_call.1}
  #allocation0 [shape = 'u32[]', space=smem, size = 0x4, offset = 0x4, fixed_abs, tag = 'smem constant byte address 0x4 - core index']
  #allocation1 [shape = 'u32[144,128]{1,0:T(1,128)}', space=vmem, size = 0x12000, scoped, tag = 'internal scratch']
  %s0 = inlined_call_operand.hbm [shape: f32[8,16], index: 0, kind: input, shape index: {}]
  %s1 = inlined_call_operand.hbm [shape: bf16[144,256], index: 1, kind: input, shape index: {}]
  %s2 = inlined_call_operand.hbm [shape: f32[8,256], index: 2, kind: input, shape index: {}]
  %s3 = inlined_call_operand.vmem [shape: f32[8,1], index: 3, kind: output, shape index: {}]
  %s4 = sld [smem:[#allocation0]]
  $region34: #{tpu_custom_call.1} parent=0
    _
  %s6 = ssub.s32 1, %s4
  %s7 = scalar_select 0, %s6, %s4
  $region1: #{tpu_custom_call.1} parent=0
    #allocation2 [shape = 'u8[4096]{0}', space=vmem, size = 0x1000, scoped, tag = 'input window, operand 0, single buffered']
    #allocation3 [shape = 's32[1]{0}', space=sflag, size = 0x4, scoped, tag = 'scoped memory for tpu_custom_call.1']
    #allocation4 [shape = 'u8[73728]{0}', space=vmem, size = 0x12000, scoped, tag = 'input window, operand 1, single buffered']
    #allocation5 [shape = 's32[1]{0}', space=sflag, size = 0x4, scoped, tag = 'scoped memory for tpu_custom_call.1']
    #allocation6 [shape = 'u8[8192]{0}', space=vmem, size = 0x2000, scoped, tag = 'input window, operand 2, single buffered']
    %8 = vsyncpa [#allocation3], 0
    %9 = vsyncpa [#allocation5], 0
    // Predicated region
    $region2: #{tpu_custom_call.1} parent=1 // pred_check
      _
    $region3: #{tpu_custom_call.1} parent=1 // pred_check_branch
      %11 = sbr.rel (0) target = $region5
    $region4: #{tpu_custom_call.1} parent=1 // pred_region
      %s13 = ssub.s32 128, 128
      %14 = vsyncadd [#allocation3], %s13
      %s16 = sshll.u32 [#allocation2], 4
      %s17 = int_to_ptr.vmem [resolvable:$true] %s16
      %19 = dma.hbm_to_vmem [thread:$0]  %s0, 128, %s17, [#allocation3]
    $region5: #{tpu_custom_call.1} parent=1 // pred_fallthru
      _
    // Predicated region
    $region6: #{tpu_custom_call.1} parent=1 // pred_check
      _
    $region7: #{tpu_custom_call.1} parent=1 // pred_check_branch
      %21 = sbr.rel (0) target = $region9
    $region8: #{tpu_custom_call.1} parent=1 // pred_region
      %s23 = ssub.s32 2304, 2304
      %24 = vsyncadd [#allocation5], %s23
      %s25 = sshll.u32 [#allocation4], 4
      %s26 = int_to_ptr.vmem [resolvable:$true] %s25
      %31 = dma.hbm_to_vmem [thread:$0]  %s1, 2304, %s26, [#allocation5], 128, 128, 8
    $region9: #{tpu_custom_call.1} parent=1 // pred_fallthru
      _
    // Predicated region
    $region10: #{tpu_custom_call.1} parent=1 // pred_check
      _
    $region11: #{tpu_custom_call.1} parent=1 // pred_check_branch
      %33 = sbr.rel (0) target = $region13
    $region12: #{tpu_custom_call.1} parent=1 // pred_region
      %s35 = ssub.s32 256, 256
      %36 = vsyncadd [#allocation5], %s35
      %s38 = sshll.u32 [#allocation6], 4
      %s39 = int_to_ptr.vmem [resolvable:$true] %s38
      %41 = dma.hbm_to_vmem [thread:$0]  %s2, 256, %s39, [#allocation5]
    $region13: #{tpu_custom_call.1} parent=1 // pred_fallthru
      _
    // Predicated region
    $region14: #{tpu_custom_call.1} parent=1 // pred_check
      _
    $region15: #{tpu_custom_call.1} parent=1 // pred_check_branch
      %43 = sbr.rel (0) target = $region17
    $region16: #{tpu_custom_call.1} parent=1 // pred_region
      %44 = dma.done [#allocation3], 128
    $region17: #{tpu_custom_call.1} parent=1 // pred_fallthru
      _
    // Predicated region
    $region18: #{tpu_custom_call.1} parent=1 // pred_check
      _
    $region19: #{tpu_custom_call.1} parent=1 // pred_check_branch
      %46 = sbr.rel (0) target = $region21
    $region20: #{tpu_custom_call.1} parent=1 // pred_region
      %47 = dma.done [#allocation5], 2304
    $region21: #{tpu_custom_call.1} parent=1 // pred_fallthru
      _
    // Predicated region
    $region22: #{tpu_custom_call.1} parent=1 // pred_check
      _
    $region23: #{tpu_custom_call.1} parent=1 // pred_check_branch
      %49 = sbr.rel (0) target = $region25
    $region24: #{tpu_custom_call.1} parent=1 // pred_region
      %50 = dma.done [#allocation5], 256
    $region25: #{tpu_custom_call.1} parent=1 // pred_fallthru
      _
    %v52 = vld [vmem:[#allocation2] sm:$0xff]
    %v53 = vpack.c.bf16 %v52, %v52
    %v54 = vld [vmem:[#allocation4] sm:$0xff]
    %v55 = vld [vmem:[#allocation4 + $0x8] sm:$0xff]
    %v58 = vunpack.c.l.b16 %v54
    %v59 = vunpack.c.h.b16 %v54
    %v60 = vunpack.c.l.b16 %v55
    %v61 = vunpack.c.h.b16 %v55
    %v62 = vpack.c.b16 %v60, %v58
    %v63 = vpack.c.b16 %v61, %v59
    %vm66 = vcmask 130048
    %v68 = vsel %vm66, %v53, 0
    %70 = vmatprep.subr.bf16.mxu0 %v63
    %71 = vmatpush1.bf16.msra.mxu0 %v62
    %72 = vmatprep.subr.bf16.mxu0 0
    %73 = vmatpush1.bf16.msra.mxu0 0
    %74 = vmatprep.subr.bf16.mxu0 0
    %75 = vmatpush1.bf16.msra.mxu0 0
    %76 = vmatprep.subr.bf16.mxu0 0
    %77 = vmatpush1.bf16.msra.mxu0 0
    %78 = vmatprep.subr.bf16.mxu0 0
    %79 = vmatpush1.bf16.msra.mxu0 0
    %80 = vmatprep.subr.bf16.mxu0 0
    %81 = vmatpush1.bf16.msra.mxu0 0
    %82 = vmatprep.subr.bf16.mxu0 0
    %83 = vmatpush1.bf16.msra.mxu0 0
    %84 = vmatprep.subr.bf16.mxu0 0
    %85 = vmatpush1.bf16.msra.mxu0 0
    %86 = vmatprep.subr.bf16.mxu0 0
    %87 = vmatpush1.bf16.msra.mxu0 0
    %88 = vmatprep.subr.bf16.mxu0 0
    %89 = vmatpush1.bf16.msra.mxu0 0
    %90 = vmatprep.subr.bf16.mxu0 0
    %91 = vmatpush1.bf16.msra.mxu0 0
    %92 = vmatprep.subr.bf16.mxu0 0
    %93 = vmatpush1.bf16.msra.mxu0 0
    %94 = vmatprep.subr.bf16.mxu0 0
    %95 = vmatpush1.bf16.msra.mxu0 0
    %96 = vmatprep.subr.bf16.mxu0 0
    %97 = vmatpush1.bf16.msra.mxu0 0
    %98 = vmatprep.subr.bf16.mxu0 0
    %99 = vmatpush1.bf16.msra.mxu0 0
    %100 = vmatprep.subr.bf16.mxu0 0
    %101 = vmatpush1.bf16.msra.mxu0 0
    %102 = vmatprep.mubr.bf16.mxu0 0
    %103 = vmatmul.mubr.bf16.gmra.mrb[0].mxu0 %v68
    %v104 = vpop.f32.mrb[0].mxu0
    %v105 = vadd.f32 0.0, %v104
    %v106 = vpop.f32.mrb[0].mxu0
    %v107 = vadd.f32 0.0, %v106
    %v108 = vpop.f32.mrb[0].mxu0
    %v109 = vpop.f32.mrb[0].mxu0
    %110 = vdwg.mxu0
    %v111 = vld [vmem:[#allocation6] sm:$0xff]
    %v112 = vld [vmem:[#allocation6 + $0x8] sm:$0xff]
    %v113 = vlaneseq
    %v114 = vshrl.u32 %v113, 7
    %v115 = vsub.s32 0, %v114
    %v116 = vrot.slane %v111, %v115
    %v117 = vadd.f32 %v105, %v116
    %v118 = vrot.slane %v117, 4
    %v119 = vadd.f32 %v117, %v118
    %v120 = vrot.slane %v119, 2
    %v121 = vadd.f32 %v119, %v120
    %v122 = vrot.slane %v121, 1
    %v123 = vadd.f32 %v121, %v122
    %v124 = vrcp.pop 8.0
    %v125 = vmul.f32 %v123, %v124
    %v126 = vsub.f32 %v117, %v125
    %v127 = vmul.f32 %v126, %v126
    %v128 = vrot.slane %v127, 4
    %v129 = vadd.f32 %v127, %v128
    %v130 = vrot.slane %v129, 2
    %v131 = vadd.f32 %v129, %v130
    %v132 = vrot.slane %v131, 1
    %v133 = vadd.f32 %v131, %v132
    %v134 = vmul.f32 %v133, %v124
    %v135 = vadd.f32 %v134, 1e-05
    %v136 = vrsqrt.pop %v135
    %v137 = vmul.f32 %v126, %v136
    %v138 = vlaneseq
    %v139 = vshrl.u32 %v138, 7
    %v140 = vsub.s32 1, %v139
    %v141 = vrot.slane %v111, %v140
    %v142 = vmul.f32 %v137, %v141
    %v143 = vlaneseq
    %v144 = vshrl.u32 %v143, 7
    %v145 = vsub.s32 2, %v144
    %v146 = vrot.slane %v111, %v145
    %v147 = vadd.f32 %v142, %v146
    %v148 = vmul.f32 %v147, 0.1
    %v149 = vmax.f32 %v147, %v148
    %v150 = vld [vmem:[#allocation4 + $0x10] sm:$0xf]
    %v151 = vld [vmem:[#allocation4 + $0x18] sm:$0xf]
    %v152 = vld [vmem:[#allocation4 + $0x20] sm:$0xf]
    %v153 = vld [vmem:[#allocation4 + $0x28] sm:$0xf]
    %v154 = vld [vmem:[#allocation4 + $0x30] sm:$0xf]
    %v155 = vld [vmem:[#allocation4 + $0x38] sm:$0xf]
    %v156 = vld [vmem:[#allocation4 + $0x40] sm:$0xf]
    %v157 = vld [vmem:[#allocation4 + $0x48] sm:$0xf]
    %v158 = vld [vmem:[#allocation4 + $0x50] sm:$0xf]
    %v159 = vld [vmem:[#allocation4 + $0x58] sm:$0xf]
    %v160 = vld [vmem:[#allocation4 + $0x60] sm:$0xf]
    %v161 = vld [vmem:[#allocation4 + $0x68] sm:$0xf]
    %v162 = vld [vmem:[#allocation4 + $0x70] sm:$0xf]
    %v163 = vld [vmem:[#allocation4 + $0x78] sm:$0xf]
    %v164 = vld [vmem:[#allocation4 + $0x80] sm:$0xf]
    %v165 = vld [vmem:[#allocation4 + $0x88] sm:$0xf]
    %v166 = vpack.c.bf16 %v149, %v149
    %v167 = vlaneseq
    %v168 = vshrl.u32 %v167, 7
    %v169 = vsub.s32 3, %v168
    %v170 = vrot.slane %v111, %v169
    %v187 = vunpack.c.l.b16 %v150
    %v188 = vunpack.c.l.b16 %v151
    %v189 = vunpack.c.l.b16 %v152
    %v190 = vunpack.c.l.b16 %v153
    %v191 = vunpack.c.l.b16 %v154
    %v192 = vunpack.c.l.b16 %v155
    %v193 = vunpack.c.l.b16 %v156
    %v194 = vunpack.c.l.b16 %v157
    %v195 = vunpack.c.l.b16 %v158
    %v196 = vunpack.c.l.b16 %v159
    %v197 = vunpack.c.l.b16 %v160
    %v198 = vunpack.c.l.b16 %v161
    %v199 = vunpack.c.l.b16 %v162
    %v200 = vunpack.c.l.b16 %v163
    %v201 = vunpack.c.l.b16 %v164
    %v202 = vunpack.c.l.b16 %v165
    %v203 = vpack.c.b16 %v188, %v187
    %v204 = vpack.c.b16 %v190, %v189
    %v205 = vpack.c.b16 %v192, %v191
    %v206 = vpack.c.b16 %v194, %v193
    %v207 = vpack.c.b16 %v196, %v195
    %v208 = vpack.c.b16 %v198, %v197
    %v209 = vpack.c.b16 %v200, %v199
    %v210 = vpack.c.b16 %v202, %v201
    %219 = vmatprep.subr.bf16.mxu0 0
    %220 = vmatpush1.bf16.msra.mxu0 %v203
    %221 = vmatprep.subr.bf16.mxu0 0
    %222 = vmatpush1.bf16.msra.mxu0 %v204
    %223 = vmatprep.subr.bf16.mxu0 0
    %224 = vmatpush1.bf16.msra.mxu0 %v205
    %225 = vmatprep.subr.bf16.mxu0 0
    %226 = vmatpush1.bf16.msra.mxu0 %v206
    %227 = vmatprep.subr.bf16.mxu0 0
    %228 = vmatpush1.bf16.msra.mxu0 %v207
    %229 = vmatprep.subr.bf16.mxu0 0
    %230 = vmatpush1.bf16.msra.mxu0 %v208
    %231 = vmatprep.subr.bf16.mxu0 0
    %232 = vmatpush1.bf16.msra.mxu0 %v209
    %233 = vmatprep.subr.bf16.mxu0 0
    %234 = vmatpush1.bf16.msra.mxu0 %v210
    %235 = vmatprep.subr.bf16.mxu0 0
    %236 = vmatpush1.bf16.msra.mxu0 0
    %237 = vmatprep.subr.bf16.mxu0 0
    %238 = vmatpush1.bf16.msra.mxu0 0
    %239 = vmatprep.subr.bf16.mxu0 0
    %240 = vmatpush1.bf16.msra.mxu0 0
    %241 = vmatprep.subr.bf16.mxu0 0
    %242 = vmatpush1.bf16.msra.mxu0 0
    %243 = vmatprep.subr.bf16.mxu0 0
    %244 = vmatpush1.bf16.msra.mxu0 0
    %245 = vmatprep.subr.bf16.mxu0 0
    %246 = vmatpush1.bf16.msra.mxu0 0
    %247 = vmatprep.subr.bf16.mxu0 0
    %248 = vmatpush1.bf16.msra.mxu0 0
    %249 = vmatprep.subr.bf16.mxu0 0
    %250 = vmatpush1.bf16.msra.mxu0 0
    %251 = vmatprep.mubr.bf16.mxu0 0
    %252 = vmatmul.mubr.bf16.gmra.mrb[0].mxu0 %v166
    %v253 = vpop.f32.mrb[0].mxu0
    %v254 = vadd.f32 %v170, %v253
    %v255 = vpop.f32.mrb[0].mxu0
    %v256 = vpop.f32.mrb[0].mxu0
    %v257 = vpop.f32.mrb[0].mxu0
    %258 = vdwg.mxu0
    %v259 = vmul.f32 %v254, 0.1
    %v260 = vmax.f32 %v254, %v259
    %v261 = vld [vmem:[#allocation4 + $0x14] sm:$0xf]
    %v262 = vld [vmem:[#allocation4 + $0x1c] sm:$0xf]
    %v263 = vld [vmem:[#allocation4 + $0x24] sm:$0xf]
    %v264 = vld [vmem:[#allocation4 + $0x2c] sm:$0xf]
    %v265 = vld [vmem:[#allocation4 + $0x34] sm:$0xf]
    %v266 = vld [vmem:[#allocation4 + $0x3c] sm:$0xf]
    %v267 = vld [vmem:[#allocation4 + $0x44] sm:$0xf]
    %v268 = vld [vmem:[#allocation4 + $0x4c] sm:$0xf]
    %v269 = vld [vmem:[#allocation4 + $0x54] sm:$0xf]
    %v270 = vld [vmem:[#allocation4 + $0x5c] sm:$0xf]
    %v271 = vld [vmem:[#allocation4 + $0x64] sm:$0xf]
    %v272 = vld [vmem:[#allocation4 + $0x6c] sm:$0xf]
    %v273 = vld [vmem:[#allocation4 + $0x74] sm:$0xf]
    %v274 = vld [vmem:[#allocation4 + $0x7c] sm:$0xf]
    %v275 = vld [vmem:[#allocation4 + $0x84] sm:$0xf]
    %v276 = vld [vmem:[#allocation4 + $0x8c] sm:$0xf]
    %v277 = vpack.c.bf16 %v260, %v260
    %v294 = vunpack.c.l.b16 %v261
    %v295 = vunpack.c.l.b16 %v262
    %v296 = vunpack.c.l.b16 %v263
    %v297 = vunpack.c.l.b16 %v264
    %v298 = vunpack.c.l.b16 %v265
    %v299 = vunpack.c.l.b16 %v266
    %v300 = vunpack.c.l.b16 %v267
    %v301 = vunpack.c.l.b16 %v268
    %v302 = vunpack.c.l.b16 %v269
    %v303 = vunpack.c.l.b16 %v270
    %v304 = vunpack.c.l.b16 %v271
    %v305 = vunpack.c.l.b16 %v272
    %v306 = vunpack.c.l.b16 %v273
    %v307 = vunpack.c.l.b16 %v274
    %v308 = vunpack.c.l.b16 %v275
    %v309 = vunpack.c.l.b16 %v276
    %v310 = vpack.c.b16 %v295, %v294
    %v311 = vpack.c.b16 %v297, %v296
    %v312 = vpack.c.b16 %v299, %v298
    %v313 = vpack.c.b16 %v301, %v300
    %v314 = vpack.c.b16 %v303, %v302
    %v315 = vpack.c.b16 %v305, %v304
    %v316 = vpack.c.b16 %v307, %v306
    %v317 = vpack.c.b16 %v309, %v308
    %326 = vmatprep.subr.bf16.mxu0 0
    %327 = vmatpush1.bf16.msra.mxu0 %v310
    %328 = vmatprep.subr.bf16.mxu0 0
    %329 = vmatpush1.bf16.msra.mxu0 %v311
    %330 = vmatprep.subr.bf16.mxu0 0
    %331 = vmatpush1.bf16.msra.mxu0 %v312
    %332 = vmatprep.subr.bf16.mxu0 0
    %333 = vmatpush1.bf16.msra.mxu0 %v313
    %334 = vmatprep.subr.bf16.mxu0 0
    %335 = vmatpush1.bf16.msra.mxu0 %v314
    %336 = vmatprep.subr.bf16.mxu0 0
    %337 = vmatpush1.bf16.msra.mxu0 %v315
    %338 = vmatprep.subr.bf16.mxu0 0
    %339 = vmatpush1.bf16.msra.mxu0 %v316
    %340 = vmatprep.subr.bf16.mxu0 0
    %341 = vmatpush1.bf16.msra.mxu0 %v317
    %342 = vmatprep.subr.bf16.mxu0 0
    %343 = vmatpush1.bf16.msra.mxu0 0
    %344 = vmatprep.subr.bf16.mxu0 0
    %345 = vmatpush1.bf16.msra.mxu0 0
    %346 = vmatprep.subr.bf16.mxu0 0
    %347 = vmatpush1.bf16.msra.mxu0 0
    %348 = vmatprep.subr.bf16.mxu0 0
    %349 = vmatpush1.bf16.msra.mxu0 0
    %350 = vmatprep.subr.bf16.mxu0 0
    %351 = vmatpush1.bf16.msra.mxu0 0
    %352 = vmatprep.subr.bf16.mxu0 0
    %353 = vmatpush1.bf16.msra.mxu0 0
    %354 = vmatprep.subr.bf16.mxu0 0
    %355 = vmatpush1.bf16.msra.mxu0 0
    %356 = vmatprep.subr.bf16.mxu0 0
    %357 = vmatpush1.bf16.msra.mxu0 0
    %358 = vmatprep.mubr.bf16.mxu0 0
    %359 = vmatmul.mubr.bf16.gmra.mrb[0].mxu0 %v277
    %v360 = vpop.f32.mrb[0].mxu0
    %v361 = vadd.f32 %v107, %v360
    %v362 = vpop.f32.mrb[0].mxu0
    %v363 = vpop.f32.mrb[0].mxu0
    %v364 = vpop.f32.mrb[0].mxu0
    %365 = vdwg.mxu0
    %v366 = vlaneseq
    %v367 = vshrl.u32 %v366, 7
    %v368 = vsub.s32 0, %v367
    %v369 = vrot.slane %v112, %v368
    %v370 = vadd.f32 %v361, %v369
    %vm371 = vcmask 7168
    %372 = vst.msk [vmem:[%s3] sm:$0xff] %vm371, %v370
    // Predicated region
    $region26: #{tpu_custom_call.1} parent=1 // pred_check
      _
    $region27: #{tpu_custom_call.1} parent=1 // pred_check_branch
      %374 = sbr.rel (0) target = $region29
    $region28: #{tpu_custom_call.1} parent=1 // pred_region
      _
    $region29: #{tpu_custom_call.1} parent=1 // pred_fallthru
      _
    // Predicated region
    $region30: #{tpu_custom_call.1} parent=1 // pred_check
      _
    $region31: #{tpu_custom_call.1} parent=1 // pred_check_branch
      %376 = sbr.rel (0) target = $region33
    $region32: #{tpu_custom_call.1} parent=1 // pred_region
      _
    $region33: #{tpu_custom_call.1} parent=1 // pred_fallthru
      _
    %377 = vsyncpa [#allocation3], 1
    %378 = vsyncpa [#allocation5], 1

</llo_original>
